<compile_context>
chip_gen: v7x
topology: tpu7x:2x2x1
jax: 0.10.0
libtpu: 0.0.40
codegen_flags: <defaults>
</compile_context>

<pallas_src>
import jax
import jax.numpy as jnp
from jax.experimental import pallas as pl
from jax.experimental.pallas import tpu as pltpu

# ---- static configuration (small shapes consistent with the module) ----
B = 2      # batch
C = 8      # n_inputs
L = 64     # n_channels (the Linear layers act on this last axis)
HID = 128  # hidden width of the block (folds away host-side)


def spatio_kernel(x_ref, p_ref, q_ref, b_ref, o_ref):
    p = p_ref[...]           # (C, C)
    q = q_ref[...]           # (L, L)
    bias = b_ref[...]        # (C, L)
    for b in range(B):       # B = 2, statically unrolled
        xb = x_ref[b]                                                   # (C, L)
        xq = jnp.dot(xb, q, preferred_element_type=jnp.float32)        # (C, L)
        fb = jnp.dot(p, xq, preferred_element_type=jnp.float32) + bias  # (C, L)
        o_ref[b] = jnp.maximum(fb, 0.0)


def fold_params(p):
    """One-time host-side fold of the affine chain into (P, Q, Bconst)."""
    P = p["we"] @ p["wa"]                                         # (C, C)
    Q = p["wc"].T @ p["wf"].T                                     # (L, L)
    s_c = jnp.sum(p["wc"], axis=1)                                # (HID,)  == Wc @ 1_L
    b_c = p["ba"][:, None] * s_c[None, :] + p["bc"][None, :]      # (HID, HID)
    b_e = p["we"] @ b_c + p["be"][:, None]                        # (C, HID)
    Bconst = b_e @ p["wf"].T + p["bf"][None, :]                   # (C, L)
    return P, Q, Bconst


_VMEM = pl.BlockSpec(memory_space=pltpu.MemorySpace.VMEM)


def spatio_block(x, folded):
    P, Q, Bconst = folded
    return pl.pallas_call(
        spatio_kernel,
        out_shape=jax.ShapeDtypeStruct((B, C, L), jnp.float32),
        in_specs=[_VMEM, _VMEM, _VMEM, _VMEM],
        out_specs=_VMEM,
    )(x, P, Q, Bconst)


def init_params(key):
    ks = jax.random.split(key, 8)
    n = lambda k, shape, s=0.01: (jax.random.normal(k, shape) * s).astype(jnp.float32)
    return {
        # effective (post-weight_norm) weights; forward math is identical
        "wa": n(ks[0], (HID, C)),  "ba": n(ks[1], (HID,)),   # net_a: Conv1d(C, 128, 1)
        "wc": n(ks[2], (HID, L)),  "bc": n(ks[3], (HID,)),   # net_c: Linear(L, 128)
        "we": n(ks[4], (C, HID)),  "be": n(ks[5], (C,)),     # net_e: Conv1d(128, C, 1)
        "wf": n(ks[6], (L, HID)),  "bf": n(ks[7], (L,)),     # net_f: Linear(128, L)
    }


def ref_forward(x, p):
    """Pure-JAX reference matching PyTorch Spatio_Block.forward (net_a->net_c->net_e->net_f->ReLU)."""
    a = jnp.einsum("oc,bcl->bol", p["wa"], x) + p["ba"][None, :, None]     # (B, HID, L)
    c = a @ p["wc"].T + p["bc"]                                            # (B, HID, HID)
    e = jnp.einsum("oc,bcl->bol", p["we"], c) + p["be"][None, :, None]     # (B, C, HID)
    f = e @ p["wf"].T + p["bf"]                                            # (B, C, L)
    return jnp.maximum(f, 0.0)


if __name__ == "__main__":
    key = jax.random.PRNGKey(0)
    kx, kp = jax.random.split(key)
    x = jax.random.normal(kx, (B, C, L), dtype=jnp.float32)
    params = init_params(kp)
    folded = jax.block_until_ready(fold_params(params))   # packed exactly once

    out = jax.block_until_ready(spatio_block(x, folded))
    ref = jax.block_until_ready(ref_forward(x, params))

    assert out.shape == (B, C, L)
    assert jnp.allclose(out, ref, rtol=1e-4, atol=1e-5), float(jnp.max(jnp.abs(out - ref)))
    print("KERNEL_OK")
</pallas_src>

<mosaic_0001>
module attributes {stable_mosaic.version = 11 : i64} {
  func.func @spatio_kernel(%arg0: memref<2x8x64xf32, #tpu.memory_space<vmem>>, %arg1: memref<8x8xf32, #tpu.memory_space<vmem>>, %arg2: memref<64x64xf32, #tpu.memory_space<vmem>>, %arg3: memref<8x64xf32, #tpu.memory_space<vmem>>, %arg4: memref<2x8x64xf32, #tpu.memory_space<vmem>>) attributes {dimension_semantics = [], scalar_prefetch = 0 : i64, scratch_operands = 0 : i64, tpu.core_type = #tpu.core_type<tc>} {
    %c0 = arith.constant 0 : index
    %c0_0 = arith.constant 0 : index
    %0 = vector.load %arg1[%c0, %c0_0] : memref<8x8xf32, #tpu.memory_space<vmem>>, vector<8x8xf32>
    %c0_1 = arith.constant 0 : index
    %c0_2 = arith.constant 0 : index
    %1 = vector.load %arg2[%c0_1, %c0_2] : memref<64x64xf32, #tpu.memory_space<vmem>>, vector<64x64xf32>
    %c0_3 = arith.constant 0 : index
    %c0_4 = arith.constant 0 : index
    %2 = vector.load %arg3[%c0_3, %c0_4] : memref<8x64xf32, #tpu.memory_space<vmem>>, vector<8x64xf32>
    %c0_5 = arith.constant 0 : index
    %c0_6 = arith.constant 0 : index
    %c0_7 = arith.constant 0 : index
    %3 = vector.load %arg0[%c0_5, %c0_6, %c0_7] : memref<2x8x64xf32, #tpu.memory_space<vmem>>, vector<1x8x64xf32>
    %4 = vector.shape_cast %3 : vector<1x8x64xf32> to vector<8x64xf32>
    %cst = arith.constant dense<0.000000e+00> : vector<8x64xf32>
    %5 = tpu.matmul %4, %1, %cst {dimension_numbers = #tpu.dot_dimension_numbers<[1], [0], [0], [1], [0, 0, 1, 1], [], []>} : vector<8x64xf32>, vector<64x64xf32>, vector<8x64xf32> -> vector<8x64xf32>
    %cst_8 = arith.constant dense<0.000000e+00> : vector<8x64xf32>
    %6 = tpu.matmul %0, %5, %cst_8 {dimension_numbers = #tpu.dot_dimension_numbers<[1], [0], [0], [1], [0, 0, 1, 1], [], []>} : vector<8x8xf32>, vector<8x64xf32>, vector<8x64xf32> -> vector<8x64xf32>
    %7 = arith.addf %6, %2 : vector<8x64xf32>
    %cst_9 = arith.constant 0.000000e+00 : f32
    %8 = vector.broadcast %cst_9 : f32 to vector<8x64xf32>
    %9 = arith.maximumf %7, %8 : vector<8x64xf32>
    %c0_10 = arith.constant 0 : index
    %c0_11 = arith.constant 0 : index
    %c0_12 = arith.constant 0 : index
    %10 = vector.load %arg4[%c0_10, %c0_11, %c0_12] : memref<2x8x64xf32, #tpu.memory_space<vmem>>, vector<1x8x64xf32>
    %11 = vector.shape_cast %10 : vector<1x8x64xf32> to vector<8x64xf32>
    %12 = vector.shape_cast %9 : vector<8x64xf32> to vector<1x8x64xf32>
    tpu.vector_store %arg4[%c0_10, %c0_11, %c0_12], %12 {strides = array<i32>} : memref<2x8x64xf32, #tpu.memory_space<vmem>>, vector<1x8x64xf32>,
    %c1 = arith.constant 1 : index
    %c0_13 = arith.constant 0 : index
    %c0_14 = arith.constant 0 : index
    %13 = vector.load %arg0[%c1, %c0_13, %c0_14] : memref<2x8x64xf32, #tpu.memory_space<vmem>>, vector<1x8x64xf32>
    %14 = vector.shape_cast %13 : vector<1x8x64xf32> to vector<8x64xf32>
    %cst_15 = arith.constant dense<0.000000e+00> : vector<8x64xf32>
    %15 = tpu.matmul %14, %1, %cst_15 {dimension_numbers = #tpu.dot_dimension_numbers<[1], [0], [0], [1], [0, 0, 1, 1], [], []>} : vector<8x64xf32>, vector<64x64xf32>, vector<8x64xf32> -> vector<8x64xf32>
    %cst_16 = arith.constant dense<0.000000e+00> : vector<8x64xf32>
    %16 = tpu.matmul %0, %15, %cst_16 {dimension_numbers = #tpu.dot_dimension_numbers<[1], [0], [0], [1], [0, 0, 1, 1], [], []>} : vector<8x8xf32>, vector<8x64xf32>, vector<8x64xf32> -> vector<8x64xf32>
    %17 = arith.addf %16, %2 : vector<8x64xf32>
    %cst_17 = arith.constant 0.000000e+00 : f32
    %18 = vector.broadcast %cst_17 : f32 to vector<8x64xf32>
    %19 = arith.maximumf %17, %18 : vector<8x64xf32>
    %c1_18 = arith.constant 1 : index
    %c0_19 = arith.constant 0 : index
    %c0_20 = arith.constant 0 : index
    %20 = vector.load %arg4[%c1_18, %c0_19, %c0_20] : memref<2x8x64xf32, #tpu.memory_space<vmem>>, vector<1x8x64xf32>
    %21 = vector.shape_cast %20 : vector<1x8x64xf32> to vector<8x64xf32>
    %22 = vector.shape_cast %19 : vector<8x64xf32> to vector<1x8x64xf32>
    tpu.vector_store %arg4[%c1_18, %c0_19, %c0_20], %22 {strides = array<i32>} : memref<2x8x64xf32, #tpu.memory_space<vmem>>, vector<1x8x64xf32>,
    return
  }
}

</mosaic_0001>

<llo_original>
// kernel: tpu_custom_call.1
$region0: #{tpu_custom_call.1}
  #allocation0 [shape = 'u32[]', space=smem, size = 0x4, offset = 0x4, fixed_abs, tag = 'smem constant byte address 0x4 - core index']
  #allocation1 [shape = 'u32[144,128]{1,0:T(1,128)}', space=vmem, size = 0x12000, scoped, tag = 'internal scratch']
  %s0 = inlined_call_operand.hbm [shape: f32[2,8,64], index: 0, kind: input, shape index: {}]
  %s1 = inlined_call_operand.hbm [shape: f32[8,8], index: 1, kind: input, shape index: {}]
  %s2 = inlined_call_operand.hbm [shape: f32[64,64], index: 2, kind: input, shape index: {}]
  %s3 = inlined_call_operand.vmem [shape: f32[8,64], index: 3, kind: input, shape index: {}]
  %s4 = inlined_call_operand.hbm [shape: f32[2,8,64], index: 4, kind: output, shape index: {}]
  %s5 = sld [smem:[#allocation0]]
  $region38: #{tpu_custom_call.1} parent=0
    _
  %s7 = ssub.s32 1, %s5
  %s8 = scalar_select 0, %s7, %s5
  $region1: #{tpu_custom_call.1} parent=0
    #allocation2 [shape = 'u8[8192]{0}', space=vmem, size = 0x2000, scoped, tag = 'input window, operand 0, single buffered']
    #allocation3 [shape = 's32[1]{0}', space=sflag, size = 0x4, scoped, tag = 'scoped memory for tpu_custom_call.1']
    #allocation4 [shape = 's32[1]{0}', space=sflag, size = 0x4, scoped, tag = 'scoped memory for tpu_custom_call.1']
    #allocation5 [shape = 'u8[4096]{0}', space=vmem, size = 0x1000, scoped, tag = 'input window, operand 1, single buffered']
    #allocation6 [shape = 's32[1]{0}', space=sflag, size = 0x4, scoped, tag = 'scoped memory for tpu_custom_call.1']
    #allocation7 [shape = 'u8[32768]{0}', space=vmem, size = 0x8000, scoped, tag = 'input window, operand 2, single buffered']
    #allocation8 [shape = 'u8[8192]{0}', space=vmem, size = 0x2000, scoped, tag = 'output window, operand 0, single buffered']
    %9 = vsyncpa [#allocation3], 0
    %10 = vsyncpa [#allocation6], 0
    %11 = vsyncpa [#allocation4], 0
    // Predicated region
    $region2: #{tpu_custom_call.1} parent=1 // pred_check
      _
    $region3: #{tpu_custom_call.1} parent=1 // pred_check_branch
      %13 = sbr.rel (0) target = $region5
    $region4: #{tpu_custom_call.1} parent=1 // pred_region
      %s15 = ssub.s32 256, 256
      %16 = vsyncadd [#allocation3], %s15
      %s17 = sshll.u32 [#allocation2], 4
      %s18 = int_to_ptr.vmem [resolvable:$true] %s17
      %23 = dma.hbm_to_vmem [thread:$0]  %s0, 256, %s18, [#allocation3], 128, 128, 8
    $region5: #{tpu_custom_call.1} parent=1 // pred_fallthru
      _
    // Predicated region
    $region6: #{tpu_custom_call.1} parent=1 // pred_check
      _
    $region7: #{tpu_custom_call.1} parent=1 // pred_check_branch
      %25 = sbr.rel (0) target = $region9
    $region8: #{tpu_custom_call.1} parent=1 // pred_region
      %s27 = ssub.s32 128, 128
      %28 = vsyncadd [#allocation6], %s27
      %s30 = sshll.u32 [#allocation5], 4
      %s31 = int_to_ptr.vmem [resolvable:$true] %s30
      %33 = dma.hbm_to_vmem [thread:$0]  %s1, 128, %s31, [#allocation6]
    $region9: #{tpu_custom_call.1} parent=1 // pred_fallthru
      _
    // Predicated region
    $region10: #{tpu_custom_call.1} parent=1 // pred_check
      _
    $region11: #{tpu_custom_call.1} parent=1 // pred_check_branch
      %35 = sbr.rel (0) target = $region13
    $region12: #{tpu_custom_call.1} parent=1 // pred_region
      %s37 = ssub.s32 1024, 1024
      %38 = vsyncadd [#allocation6], %s37
      %s39 = sshll.u32 [#allocation7], 4
      %s40 = int_to_ptr.vmem [resolvable:$true] %s39
      %45 = dma.hbm_to_vmem [thread:$0]  %s2, 1024, %s40, [#allocation6], 128, 128, 8
    $region13: #{tpu_custom_call.1} parent=1 // pred_fallthru
      _
    // Predicated region
    $region14: #{tpu_custom_call.1} parent=1 // pred_check
      _
    $region15: #{tpu_custom_call.1} parent=1 // pred_check_branch
      %47 = sbr.rel (0) target = $region17
    $region16: #{tpu_custom_call.1} parent=1 // pred_region
      _
    $region17: #{tpu_custom_call.1} parent=1 // pred_fallthru
      _
    // Predicated region
    $region18: #{tpu_custom_call.1} parent=1 // pred_check
      _
    $region19: #{tpu_custom_call.1} parent=1 // pred_check_branch
      %49 = sbr.rel (0) target = $region21
    $region20: #{tpu_custom_call.1} parent=1 // pred_region
      %50 = dma.done [#allocation3], 256
    $region21: #{tpu_custom_call.1} parent=1 // pred_fallthru
      _
    // Predicated region
    $region22: #{tpu_custom_call.1} parent=1 // pred_check
      _
    $region23: #{tpu_custom_call.1} parent=1 // pred_check_branch
      %52 = sbr.rel (0) target = $region25
    $region24: #{tpu_custom_call.1} parent=1 // pred_region
      %53 = dma.done [#allocation6], 128
    $region25: #{tpu_custom_call.1} parent=1 // pred_fallthru
      _
    // Predicated region
    $region26: #{tpu_custom_call.1} parent=1 // pred_check
      _
    $region27: #{tpu_custom_call.1} parent=1 // pred_check_branch
      %55 = sbr.rel (0) target = $region29
    $region28: #{tpu_custom_call.1} parent=1 // pred_region
      %56 = dma.done [#allocation6], 1024
    $region29: #{tpu_custom_call.1} parent=1 // pred_fallthru
      _
    %v57 = vld [vmem:[#allocation5] sm:$0xff]
    %v58 = vld [vmem:[#allocation7] sm:$0xff]
    %v59 = vld [vmem:[#allocation7 + $0x8] sm:$0xff]
    %v60 = vld [vmem:[#allocation7 + $0x10] sm:$0xff]
    %v61 = vld [vmem:[#allocation7 + $0x18] sm:$0xff]
    %v62 = vld [vmem:[#allocation7 + $0x20] sm:$0xff]
    %v63 = vld [vmem:[#allocation7 + $0x28] sm:$0xff]
    %v64 = vld [vmem:[#allocation7 + $0x30] sm:$0xff]
    %v65 = vld [vmem:[#allocation7 + $0x38] sm:$0xff]
    %v66 = vld [vmem:[%s3] sm:$0xff]
    %v67 = vld [vmem:[#allocation2] sm:$0xff]
    %vm68 = vcmask 523264
    %v70 = vsel %vm68, %v67, 0
    %72 = vmatprep.subr.mxu0 0.0
    %73 = vmatpush1.msra.mxu0 %v58
    %74 = vmatprep.subr.mxu0 0.0
    %75 = vmatpush1.msra.mxu0 %v59
    %76 = vmatprep.subr.mxu0 0.0
    %77 = vmatpush1.msra.mxu0 %v60
    %78 = vmatprep.subr.mxu0 0.0
    %79 = vmatpush1.msra.mxu0 %v61
    %80 = vmatprep.subr.mxu0 0.0
    %81 = vmatpush1.msra.mxu0 %v62
    %82 = vmatprep.subr.mxu0 0.0
    %83 = vmatpush1.msra.mxu0 %v63
    %84 = vmatprep.subr.mxu0 0.0
    %85 = vmatpush1.msra.mxu0 %v64
    %86 = vmatprep.subr.mxu0 0.0
    %87 = vmatpush1.msra.mxu0 %v65
    %88 = vmatprep.subr.mxu0 0.0
    %89 = vmatpush1.msra.mxu0 0.0
    %90 = vmatprep.subr.mxu0 0.0
    %91 = vmatpush1.msra.mxu0 0.0
    %92 = vmatprep.subr.mxu0 0.0
    %93 = vmatpush1.msra.mxu0 0.0
    %94 = vmatprep.subr.mxu0 0.0
    %95 = vmatpush1.msra.mxu0 0.0
    %96 = vmatprep.subr.mxu0 0.0
    %97 = vmatpush1.msra.mxu0 0.0
    %98 = vmatprep.subr.mxu0 0.0
    %99 = vmatpush1.msra.mxu0 0.0
    %100 = vmatprep.subr.mxu0 0.0
    %101 = vmatpush1.msra.mxu0 0.0
    %102 = vmatprep.subr.mxu0 0.0
    %103 = vmatpush1.msra.mxu0 0.0
    %104 = vmatprep.subr.mxu0 0.0
    %105 = vmatpush1.msra.mxu0 0.0
    %106 = vmatprep.subr.mxu0 0.0
    %107 = vmatpush1.msra.mxu0 0.0
    %108 = vmatprep.subr.mxu0 0.0
    %109 = vmatpush1.msra.mxu0 0.0
    %110 = vmatprep.subr.mxu0 0.0
    %111 = vmatpush1.msra.mxu0 0.0
    %112 = vmatprep.subr.mxu0 0.0
    %113 = vmatpush1.msra.mxu0 0.0
    %114 = vmatprep.subr.mxu0 0.0
    %115 = vmatpush1.msra.mxu0 0.0
    %116 = vmatprep.subr.mxu0 0.0
    %117 = vmatpush1.msra.mxu0 0.0
    %118 = vmatprep.subr.mxu0 0.0
    %119 = vmatpush1.msra.mxu0 0.0
    %120 = vmatprep.subr.mxu0 0.0
    %121 = vmatpush1.msra.mxu0 0.0
    %122 = vmatprep.subr.mxu0 0.0
    %123 = vmatpush1.msra.mxu0 0.0
    %124 = vmatprep.subr.mxu0 0.0
    %125 = vmatpush1.msra.mxu0 0.0
    %126 = vmatprep.subr.mxu0 0.0
    %127 = vmatpush1.msra.mxu0 0.0
    %128 = vmatprep.subr.mxu0 0.0
    %129 = vmatpush1.msra.mxu0 0.0
    %130 = vmatprep.subr.mxu0 0.0
    %131 = vmatpush1.msra.mxu0 0.0
    %132 = vmatprep.subr.mxu0 0.0
    %133 = vmatpush1.msra.mxu0 0.0
    %134 = vmatprep.subr.mxu0 0.0
    %135 = vmatpush1.msra.mxu0 0.0
    %136 = vmatprep.mubr.f32.mxu0 0.0
    %137 = vmatmul.mubr.f32.gmra.mrb[0].mxu0 %v70
    %v138 = vpop.f32.mrb[0].mxu0
    %v139 = vadd.f32 0.0, %v138
    %v140 = vpop.f32.mrb[0].mxu0
    %141 = vdwg.mxu0
    %vm142 = vcmask 64512
    %v144 = vsel %vm142, %v57, 0
    %146 = vmatprep.subr.mxu0 0.0
    %147 = vmatpush1.msra.mxu0 %v139
    %148 = vmatprep.subr.mxu0 0.0
    %149 = vmatpush1.msra.mxu0 0.0
    %150 = vmatprep.subr.mxu0 0.0
    %151 = vmatpush1.msra.mxu0 0.0
    %152 = vmatprep.subr.mxu0 0.0
    %153 = vmatpush1.msra.mxu0 0.0
    %154 = vmatprep.subr.mxu0 0.0
    %155 = vmatpush1.msra.mxu0 0.0
    %156 = vmatprep.subr.mxu0 0.0
    %157 = vmatpush1.msra.mxu0 0.0
    %158 = vmatprep.subr.mxu0 0.0
    %159 = vmatpush1.msra.mxu0 0.0
    %160 = vmatprep.subr.mxu0 0.0
    %161 = vmatpush1.msra.mxu0 0.0
    %162 = vmatprep.subr.mxu0 0.0
    %163 = vmatpush1.msra.mxu0 0.0
    %164 = vmatprep.subr.mxu0 0.0
    %165 = vmatpush1.msra.mxu0 0.0
    %166 = vmatprep.subr.mxu0 0.0
    %167 = vmatpush1.msra.mxu0 0.0
    %168 = vmatprep.subr.mxu0 0.0
    %169 = vmatpush1.msra.mxu0 0.0
    %170 = vmatprep.subr.mxu0 0.0
    %171 = vmatpush1.msra.mxu0 0.0
    %172 = vmatprep.subr.mxu0 0.0
    %173 = vmatpush1.msra.mxu0 0.0
    %174 = vmatprep.subr.mxu0 0.0
    %175 = vmatpush1.msra.mxu0 0.0
    %176 = vmatprep.subr.mxu0 0.0
    %177 = vmatpush1.msra.mxu0 0.0
    %178 = vmatprep.subr.mxu0 0.0
    %179 = vmatpush1.msra.mxu0 0.0
    %180 = vmatprep.subr.mxu0 0.0
    %181 = vmatpush1.msra.mxu0 0.0
    %182 = vmatprep.subr.mxu0 0.0
    %183 = vmatpush1.msra.mxu0 0.0
    %184 = vmatprep.subr.mxu0 0.0
    %185 = vmatpush1.msra.mxu0 0.0
    %186 = vmatprep.subr.mxu0 0.0
    %187 = vmatpush1.msra.mxu0 0.0
    %188 = vmatprep.subr.mxu0 0.0
    %189 = vmatpush1.msra.mxu0 0.0
    %190 = vmatprep.subr.mxu0 0.0
    %191 = vmatpush1.msra.mxu0 0.0
    %192 = vmatprep.subr.mxu0 0.0
    %193 = vmatpush1.msra.mxu0 0.0
    %194 = vmatprep.subr.mxu0 0.0
    %195 = vmatpush1.msra.mxu0 0.0
    %196 = vmatprep.subr.mxu0 0.0
    %197 = vmatpush1.msra.mxu0 0.0
    %198 = vmatprep.subr.mxu0 0.0
    %199 = vmatpush1.msra.mxu0 0.0
    %200 = vmatprep.subr.mxu0 0.0
    %201 = vmatpush1.msra.mxu0 0.0
    %202 = vmatprep.subr.mxu0 0.0
    %203 = vmatpush1.msra.mxu0 0.0
    %204 = vmatprep.subr.mxu0 0.0
    %205 = vmatpush1.msra.mxu0 0.0
    %206 = vmatprep.subr.mxu0 0.0
    %207 = vmatpush1.msra.mxu0 0.0
    %208 = vmatprep.subr.mxu0 0.0
    %209 = vmatpush1.msra.mxu0 0.0
    %210 = vmatprep.mubr.f32.mxu0 0.0
    %211 = vmatmul.mubr.f32.gmra.mrb[0].mxu0 %v144
    %v212 = vpop.f32.mrb[0].mxu0
    %v213 = vadd.f32 %v66, %v212
    %v214 = vpop.f32.mrb[0].mxu0
    %215 = vdwg.mxu0
    %v216 = vmax.f32 %v213, 0.0
    %217 = vst.msk [vmem:[#allocation8] sm:$0xff] %vm68, %v216
    %s218 = scalar_lea.vmem [#allocation2], 8
    %v219 = vld [vmem:[%s218] sm:$0xff]
    %v221 = vsel %vm68, %v219, 0
    %223 = vmatprep.subr.mxu0 0.0
    %224 = vmatpush1.msra.mxu0 %v58
    %225 = vmatprep.subr.mxu0 0.0
    %226 = vmatpush1.msra.mxu0 %v59
    %227 = vmatprep.subr.mxu0 0.0
    %228 = vmatpush1.msra.mxu0 %v60
    %229 = vmatprep.subr.mxu0 0.0
    %230 = vmatpush1.msra.mxu0 %v61
    %231 = vmatprep.subr.mxu0 0.0
    %232 = vmatpush1.msra.mxu0 %v62
    %233 = vmatprep.subr.mxu0 0.0
    %234 = vmatpush1.msra.mxu0 %v63
    %235 = vmatprep.subr.mxu0 0.0
    %236 = vmatpush1.msra.mxu0 %v64
    %237 = vmatprep.subr.mxu0 0.0
    %238 = vmatpush1.msra.mxu0 %v65
    %239 = vmatprep.subr.mxu0 0.0
    %240 = vmatpush1.msra.mxu0 0.0
    %241 = vmatprep.subr.mxu0 0.0
    %242 = vmatpush1.msra.mxu0 0.0
    %243 = vmatprep.subr.mxu0 0.0
    %244 = vmatpush1.msra.mxu0 0.0
    %245 = vmatprep.subr.mxu0 0.0
    %246 = vmatpush1.msra.mxu0 0.0
    %247 = vmatprep.subr.mxu0 0.0
    %248 = vmatpush1.msra.mxu0 0.0
    %249 = vmatprep.subr.mxu0 0.0
    %250 = vmatpush1.msra.mxu0 0.0
    %251 = vmatprep.subr.mxu0 0.0
    %252 = vmatpush1.msra.mxu0 0.0
    %253 = vmatprep.subr.mxu0 0.0
    %254 = vmatpush1.msra.mxu0 0.0
    %255 = vmatprep.subr.mxu0 0.0
    %256 = vmatpush1.msra.mxu0 0.0
    %257 = vmatprep.subr.mxu0 0.0
    %258 = vmatpush1.msra.mxu0 0.0
    %259 = vmatprep.subr.mxu0 0.0
    %260 = vmatpush1.msra.mxu0 0.0
    %261 = vmatprep.subr.mxu0 0.0
    %262 = vmatpush1.msra.mxu0 0.0
    %263 = vmatprep.subr.mxu0 0.0
    %264 = vmatpush1.msra.mxu0 0.0
    %265 = vmatprep.subr.mxu0 0.0
    %266 = vmatpush1.msra.mxu0 0.0
    %267 = vmatprep.subr.mxu0 0.0
    %268 = vmatpush1.msra.mxu0 0.0
    %269 = vmatprep.subr.mxu0 0.0
    %270 = vmatpush1.msra.mxu0 0.0
    %271 = vmatprep.subr.mxu0 0.0
    %272 = vmatpush1.msra.mxu0 0.0
    %273 = vmatprep.subr.mxu0 0.0
    %274 = vmatpush1.msra.mxu0 0.0
    %275 = vmatprep.subr.mxu0 0.0
    %276 = vmatpush1.msra.mxu0 0.0
    %277 = vmatprep.subr.mxu0 0.0
    %278 = vmatpush1.msra.mxu0 0.0
    %279 = vmatprep.subr.mxu0 0.0
    %280 = vmatpush1.msra.mxu0 0.0
    %281 = vmatprep.subr.mxu0 0.0
    %282 = vmatpush1.msra.mxu0 0.0
    %283 = vmatprep.subr.mxu0 0.0
    %284 = vmatpush1.msra.mxu0 0.0
    %285 = vmatprep.subr.mxu0 0.0
    %286 = vmatpush1.msra.mxu0 0.0
    %287 = vmatprep.mubr.f32.mxu0 0.0
    %288 = vmatmul.mubr.f32.gmra.mrb[0].mxu0 %v221
    %v289 = vpop.f32.mrb[0].mxu0
    %v290 = vadd.f32 0.0, %v289
    %v291 = vpop.f32.mrb[0].mxu0
    %292 = vdwg.mxu0
    %293 = vmatprep.subr.mxu0 0.0
    %294 = vmatpush1.msra.mxu0 %v290
    %295 = vmatprep.subr.mxu0 0.0
    %296 = vmatpush1.msra.mxu0 0.0
    %297 = vmatprep.subr.mxu0 0.0
    %298 = vmatpush1.msra.mxu0 0.0
    %299 = vmatprep.subr.mxu0 0.0
    %300 = vmatpush1.msra.mxu0 0.0
    %301 = vmatprep.subr.mxu0 0.0
    %302 = vmatpush1.msra.mxu0 0.0
    %303 = vmatprep.subr.mxu0 0.0
    %304 = vmatpush1.msra.mxu0 0.0
    %305 = vmatprep.subr.mxu0 0.0
    %306 = vmatpush1.msra.mxu0 0.0
    %307 = vmatprep.subr.mxu0 0.0
    %308 = vmatpush1.msra.mxu0 0.0
    %309 = vmatprep.subr.mxu0 0.0
    %310 = vmatpush1.msra.mxu0 0.0
    %311 = vmatprep.subr.mxu0 0.0
    %312 = vmatpush1.msra.mxu0 0.0
    %313 = vmatprep.subr.mxu0 0.0
    %314 = vmatpush1.msra.mxu0 0.0
    %315 = vmatprep.subr.mxu0 0.0
    %316 = vmatpush1.msra.mxu0 0.0
    %317 = vmatprep.subr.mxu0 0.0
    %318 = vmatpush1.msra.mxu0 0.0
    %319 = vmatprep.subr.mxu0 0.0
    %320 = vmatpush1.msra.mxu0 0.0
    %321 = vmatprep.subr.mxu0 0.0
    %322 = vmatpush1.msra.mxu0 0.0
    %323 = vmatprep.subr.mxu0 0.0
    %324 = vmatpush1.msra.mxu0 0.0
    %325 = vmatprep.subr.mxu0 0.0
    %326 = vmatpush1.msra.mxu0 0.0
    %327 = vmatprep.subr.mxu0 0.0
    %328 = vmatpush1.msra.mxu0 0.0
    %329 = vmatprep.subr.mxu0 0.0
    %330 = vmatpush1.msra.mxu0 0.0
    %331 = vmatprep.subr.mxu0 0.0
    %332 = vmatpush1.msra.mxu0 0.0
    %333 = vmatprep.subr.mxu0 0.0
    %334 = vmatpush1.msra.mxu0 0.0
    %335 = vmatprep.subr.mxu0 0.0
    %336 = vmatpush1.msra.mxu0 0.0
    %337 = vmatprep.subr.mxu0 0.0
    %338 = vmatpush1.msra.mxu0 0.0
    %339 = vmatprep.subr.mxu0 0.0
    %340 = vmatpush1.msra.mxu0 0.0
    %341 = vmatprep.subr.mxu0 0.0
    %342 = vmatpush1.msra.mxu0 0.0
    %343 = vmatprep.subr.mxu0 0.0
    %344 = vmatpush1.msra.mxu0 0.0
    %345 = vmatprep.subr.mxu0 0.0
    %346 = vmatpush1.msra.mxu0 0.0
    %347 = vmatprep.subr.mxu0 0.0
    %348 = vmatpush1.msra.mxu0 0.0
    %349 = vmatprep.subr.mxu0 0.0
    %350 = vmatpush1.msra.mxu0 0.0
    %351 = vmatprep.subr.mxu0 0.0
    %352 = vmatpush1.msra.mxu0 0.0
    %353 = vmatprep.subr.mxu0 0.0
    %354 = vmatpush1.msra.mxu0 0.0
    %355 = vmatprep.subr.mxu0 0.0
    %356 = vmatpush1.msra.mxu0 0.0
    %357 = vmatprep.mubr.f32.mxu0 0.0
    %358 = vmatmul.mubr.f32.gmra.mrb[0].mxu0 %v144
    %v359 = vpop.f32.mrb[0].mxu0
    %v360 = vadd.f32 %v66, %v359
    %v361 = vpop.f32.mrb[0].mxu0
    %362 = vdwg.mxu0
    %v363 = vmax.f32 %v360, 0.0
    %s364 = scalar_lea.vmem [#allocation8], 8
    %365 = vst.msk [vmem:[%s364] sm:$0xff] %vm68, %v363
    // Predicated region
    $region30: #{tpu_custom_call.1} parent=1 // pred_check
      _
    $region31: #{tpu_custom_call.1} parent=1 // pred_check_branch
      %367 = sbr.rel (0) target = $region33
    $region32: #{tpu_custom_call.1} parent=1 // pred_region
      %s369 = ssub.s32 256, 256
      %370 = vsyncadd [#allocation4], %s369
      %s371 = sshll.u32 [#allocation8], 4
      %s372 = int_to_ptr.vmem [resolvable:$true] %s371
      %377 = dma.vmem_to_hbm [thread:$0]  %s372, 256, %s4, [#allocation4], 128, 128, 8
    $region33: #{tpu_custom_call.1} parent=1 // pred_fallthru
      _
    // Predicated region
    $region34: #{tpu_custom_call.1} parent=1 // pred_check
      _
    $region35: #{tpu_custom_call.1} parent=1 // pred_check_branch
      %379 = sbr.rel (0) target = $region37
    $region36: #{tpu_custom_call.1} parent=1 // pred_region
      %380 = dma.done [#allocation4], 256
    $region37: #{tpu_custom_call.1} parent=1 // pred_fallthru
      _
    %381 = vsyncpa [#allocation3], 1
    %382 = vsyncpa [#allocation6], 1
    %383 = vsyncpa [#allocation4], 1

</llo_original>
